<compile_context>
chip_gen: v6e
topology: v6e:2x2x1
jax: 0.10.0
libtpu: 0.0.40
codegen_flags: <defaults>
</compile_context>

<pallas_src>
import jax
import jax.numpy as jnp
from jax.experimental import pallas as pl
from jax.experimental.pallas import tpu as pltpu


def pelinear_kernel(xr_ref, xi_ref, wr_ref, wi_ref, bias_ref, out_ref):
    xr = xr_ref[...]                  # (TB, D) real part of the activations
    xi = xi_ref[...]                  # (TB, D) imag part
    wr = wr_ref[...]                  # (1, D)  real part of the weight row
    wi = wi_ref[...]                  # (1, D)  imag part
    br = bias_ref[0]                  # scalar bias (real), SMEM
    bi = bias_ref[1]                  # scalar bias (imag), SMEM

    # Complex dot of every batch row with w:  x . w
    s_re = jnp.sum(xr * wr - xi * wi, axis=-1, keepdims=True)    # (TB, 1)
    s_im = jnp.sum(xr * wi + xi * wr, axis=-1, keepdims=True)    # (TB, 1)

    # Row sums of x.
    rs_re = jnp.sum(xr, axis=-1, keepdims=True)                  # (TB, 1)
    rs_im = jnp.sum(xi, axis=-1, keepdims=True)                  # (TB, 1)

    # x @ sym = (x . w) * 1^T + rowsum(x) * conj(w)^T, plus the scalar bias.
    #   rowsum(x) * conj(w) = (rs_re + i*rs_im)(wr - i*wi)
    yr = s_re + rs_re * wr + rs_im * wi + br                     # (TB, D)
    yi = s_im + rs_im * wr - rs_re * wi + bi                     # (TB, D)

    # One lane-dense store: [real | imag] packed along the lane axis.
    out_ref[...] = jnp.concatenate([yr, yi], axis=-1)            # (TB, 2D)


def pelinear_forward(x_re, x_im, w_re, w_im, b_re, b_im, *, block_b=None):
    """PELinear forward: returns (out_re, out_im), each (B, D) float32."""
    B, D = x_re.shape
    if block_b is None:
        block_b = B if B <= 256 else 256
    assert B % block_b == 0, "batch must be divisible by the batch tile"
    grid = (B // block_b,)

    wr2 = w_re.reshape(1, D).astype(jnp.float32)
    wi2 = w_im.reshape(1, D).astype(jnp.float32)
    bias = jnp.concatenate(
        [b_re.reshape(-1), b_im.reshape(-1)]).astype(jnp.float32)   # (2,)

    out = pl.pallas_call(
        pelinear_kernel,
        out_shape=jax.ShapeDtypeStruct((B, 2 * D), jnp.float32),
        grid=grid,
        in_specs=[
            pl.BlockSpec((block_b, D), lambda i: (i, 0)),     # x_re
            pl.BlockSpec((block_b, D), lambda i: (i, 0)),     # x_im
            pl.BlockSpec((1, D), lambda i: (0, 0)),           # w_re
            pl.BlockSpec((1, D), lambda i: (0, 0)),           # w_im
            pl.BlockSpec(memory_space=pltpu.MemorySpace.SMEM),  # bias (2,)
        ],
        out_specs=pl.BlockSpec((block_b, 2 * D), lambda i: (i, 0)),
        compiler_params=pltpu.CompilerParams(
            dimension_semantics=("parallel",)),
    )(x_re, x_im, wr2, wi2, bias)

    return out[:, :D], out[:, D:]


def pelinear_ref(x_re, x_im, w_re, w_im, b_re, b_im):
    """Pure-JAX reference mirroring the PyTorch PELinear.forward."""
    x = x_re + 1j * x_im
    w = w_re + 1j * w_im
    sym = w[:, None] + jnp.conj(w)[None, :]          # sym[i, j] = w[i] + conj(w[j])
    out = x @ sym + (b_re + 1j * b_im)
    return jnp.real(out), jnp.imag(out)


if __name__ == "__main__":
    # Small shapes consistent with the module: (batch, in_features).
    B, D = 64, 32

    key = jax.random.PRNGKey(0)
    keys = jax.random.split(key, 6)
    scale = 1.0 / jnp.sqrt(jnp.float32(D))

    w_re = jax.random.normal(keys[0], (D,), jnp.float32) * scale
    w_im = jax.random.normal(keys[1], (D,), jnp.float32) * scale
    b_re = jax.random.normal(keys[2], (1,), jnp.float32) * scale
    b_im = jax.random.normal(keys[3], (1,), jnp.float32) * scale
    x_re = jax.random.normal(keys[4], (B, D), jnp.float32)
    x_im = jax.random.normal(keys[5], (B, D), jnp.float32)

    o_re, o_im = pelinear_forward(x_re, x_im, w_re, w_im, b_re, b_im,
                                  block_b=32)
    jax.block_until_ready((o_re, o_im))

    r_re, r_im = pelinear_ref(x_re, x_im, w_re, w_im, b_re, b_im)
    assert jnp.allclose(o_re, r_re, atol=1e-4, rtol=1e-4), "real part mismatch"
    assert jnp.allclose(o_im, r_im, atol=1e-4, rtol=1e-4), "imag part mismatch"

    print("KERNEL_OK")
</pallas_src>

<mosaic_0001>
module attributes {stable_mosaic.version = 11 : i64} {
  func.func @pelinear_kernel(%arg0: i32, %arg1: memref<32x32xf32, #tpu.memory_space<vmem>>, %arg2: memref<32x32xf32, #tpu.memory_space<vmem>>, %arg3: memref<1x32xf32, #tpu.memory_space<vmem>>, %arg4: memref<1x32xf32, #tpu.memory_space<vmem>>, %arg5: memref<2xf32, #tpu.memory_space<smem>>, %arg6: memref<32x64xf32, #tpu.memory_space<vmem>>) attributes {dimension_semantics = [#tpu.dimension_semantics<parallel>], iteration_bounds = array<i64: 2>, scalar_prefetch = 0 : i64, scratch_operands = 0 : i64, tpu.core_type = #tpu.core_type<tc>, window_params = [{transform_indices = @transform_0, window_bounds = array<i64: 32, 32>}, {transform_indices = @transform_1, window_bounds = array<i64: 32, 32>}, {pipeline_mode = #tpu.pipeline_mode<synchronous>, transform_indices = @transform_2, window_bounds = array<i64: 1, 32>}, {pipeline_mode = #tpu.pipeline_mode<synchronous>, transform_indices = @transform_3, window_bounds = array<i64: 1, 32>}, {transform_indices = @transform_4, window_bounds = array<i64: 2>}, {transform_indices = @transform_5, window_bounds = array<i64: 32, 64>}]} {
    %c0 = arith.constant 0 : index
    %c0_0 = arith.constant 0 : index
    %0 = vector.load %arg1[%c0, %c0_0] : memref<32x32xf32, #tpu.memory_space<vmem>>, vector<32x32xf32>
    %c0_1 = arith.constant 0 : index
    %c0_2 = arith.constant 0 : index
    %1 = vector.load %arg2[%c0_1, %c0_2] : memref<32x32xf32, #tpu.memory_space<vmem>>, vector<32x32xf32>
    %c0_3 = arith.constant 0 : index
    %c0_4 = arith.constant 0 : index
    %2 = vector.load %arg3[%c0_3, %c0_4] : memref<1x32xf32, #tpu.memory_space<vmem>>, vector<1x32xf32>
    %c0_5 = arith.constant 0 : index
    %c0_6 = arith.constant 0 : index
    %3 = vector.load %arg4[%c0_5, %c0_6] : memref<1x32xf32, #tpu.memory_space<vmem>>, vector<1x32xf32>
    %c0_7 = arith.constant 0 : index
    %4 = memref.load %arg5[%c0_7] : memref<2xf32, #tpu.memory_space<smem>>
    %c1 = arith.constant 1 : index
    %5 = memref.load %arg5[%c1] : memref<2xf32, #tpu.memory_space<smem>>
    %6 = vector.broadcast %2 : vector<1x32xf32> to vector<32x32xf32>
    %7 = arith.mulf %0, %6 : vector<32x32xf32>
    %8 = vector.broadcast %3 : vector<1x32xf32> to vector<32x32xf32>
    %9 = arith.mulf %1, %8 : vector<32x32xf32>
    %10 = arith.subf %7, %9 : vector<32x32xf32>
    %cst = arith.constant dense<0.000000e+00> : vector<32xf32>
    %11 = vector.multi_reduction <add>, %10, %cst [1] : vector<32x32xf32> to vector<32xf32>
    %12 = vector.shape_cast %11 : vector<32xf32> to vector<32x1xf32>
    %13 = vector.broadcast %3 : vector<1x32xf32> to vector<32x32xf32>
    %14 = arith.mulf %0, %13 : vector<32x32xf32>
    %15 = vector.broadcast %2 : vector<1x32xf32> to vector<32x32xf32>
    %16 = arith.mulf %1, %15 : vector<32x32xf32>
    %17 = arith.addf %14, %16 : vector<32x32xf32>
    %cst_8 = arith.constant dense<0.000000e+00> : vector<32xf32>
    %18 = vector.multi_reduction <add>, %17, %cst_8 [1] : vector<32x32xf32> to vector<32xf32>
    %19 = vector.shape_cast %18 : vector<32xf32> to vector<32x1xf32>
    %cst_9 = arith.constant dense<0.000000e+00> : vector<32xf32>
    %20 = vector.multi_reduction <add>, %0, %cst_9 [1] : vector<32x32xf32> to vector<32xf32>
    %21 = vector.shape_cast %20 : vector<32xf32> to vector<32x1xf32>
    %cst_10 = arith.constant dense<0.000000e+00> : vector<32xf32>
    %22 = vector.multi_reduction <add>, %1, %cst_10 [1] : vector<32x32xf32> to vector<32xf32>
    %23 = vector.shape_cast %22 : vector<32xf32> to vector<32x1xf32>
    %24 = vector.broadcast %21 : vector<32x1xf32> to vector<32x32xf32>
    %25 = vector.broadcast %2 : vector<1x32xf32> to vector<32x32xf32>
    %26 = arith.mulf %24, %25 : vector<32x32xf32>
    %27 = vector.broadcast %12 : vector<32x1xf32> to vector<32x32xf32>
    %28 = arith.addf %27, %26 : vector<32x32xf32>
    %29 = vector.broadcast %23 : vector<32x1xf32> to vector<32x32xf32>
    %30 = vector.broadcast %3 : vector<1x32xf32> to vector<32x32xf32>
    %31 = arith.mulf %29, %30 : vector<32x32xf32>
    %32 = arith.addf %28, %31 : vector<32x32xf32>
    %33 = vector.broadcast %4 : f32 to vector<32x32xf32>
    %34 = arith.addf %32, %33 : vector<32x32xf32>
    %35 = vector.broadcast %23 : vector<32x1xf32> to vector<32x32xf32>
    %36 = vector.broadcast %2 : vector<1x32xf32> to vector<32x32xf32>
    %37 = arith.mulf %35, %36 : vector<32x32xf32>
    %38 = vector.broadcast %19 : vector<32x1xf32> to vector<32x32xf32>
    %39 = arith.addf %38, %37 : vector<32x32xf32>
    %40 = vector.broadcast %21 : vector<32x1xf32> to vector<32x32xf32>
    %41 = vector.broadcast %3 : vector<1x32xf32> to vector<32x32xf32>
    %42 = arith.mulf %40, %41 : vector<32x32xf32>
    %43 = arith.subf %39, %42 : vector<32x32xf32>
    %44 = vector.broadcast %5 : f32 to vector<32x32xf32>
    %45 = arith.addf %43, %44 : vector<32x32xf32>
    %46 = tpu.concatenate %34, %45 in 1 : vector<32x32xf32>, vector<32x32xf32> -> vector<32x64xf32>
    %c0_11 = arith.constant 0 : index
    %c0_12 = arith.constant 0 : index
    %47 = vector.load %arg6[%c0_11, %c0_12] : memref<32x64xf32, #tpu.memory_space<vmem>>, vector<32x64xf32>
    tpu.vector_store %arg6[%c0_11, %c0_12], %46 {strides = array<i32>} : memref<32x64xf32, #tpu.memory_space<vmem>>, vector<32x64xf32>,
    return
  }
  func.func @transform_0(%arg0: i32) -> (i32, i32) {
    %c0_i32 = arith.constant 0 : i32
    %c0_i32_0 = arith.constant 0 : i32
    return %arg0, %c0_i32 : i32, i32
  }
  func.func @transform_1(%arg0: i32) -> (i32, i32) {
    %c0_i32 = arith.constant 0 : i32
    %c0_i32_0 = arith.constant 0 : i32
    return %arg0, %c0_i32 : i32, i32
  }
  func.func @transform_2(%arg0: i32) -> (i32, i32) {
    %c0_i32 = arith.constant 0 : i32
    %c0_i32_0 = arith.constant 0 : i32
    %c0_i32_1 = arith.constant 0 : i32
    return %c0_i32, %c0_i32_0 : i32, i32
  }
  func.func @transform_3(%arg0: i32) -> (i32, i32) {
    %c0_i32 = arith.constant 0 : i32
    %c0_i32_0 = arith.constant 0 : i32
    %c0_i32_1 = arith.constant 0 : i32
    return %c0_i32, %c0_i32_0 : i32, i32
  }
  func.func @transform_4(%arg0: i32) -> i32 {
    %c0_i32 = arith.constant 0 : i32
    %c0_i32_0 = arith.constant 0 : i32
    return %c0_i32 : i32
  }
  func.func @transform_5(%arg0: i32) -> (i32, i32) {
    %c0_i32 = arith.constant 0 : i32
    %c0_i32_0 = arith.constant 0 : i32
    return %arg0, %c0_i32 : i32, i32
  }
}

</mosaic_0001>

<llo_original>
// kernel: tpu_custom_call.1
$region0: #{tpu_custom_call.1}
  #allocation0 [shape = 'u32[]', space=smem, size = 0x4, offset = 0x4, fixed_abs, tag = 'smem constant byte address 0x4 - core index']
  #allocation1 [shape = 'u32[144,128]{1,0:T(1,128)}', space=vmem, size = 0x12000, scoped, tag = 'internal scratch']
  %s0 = inlined_call_operand.vmem [shape: f32[64,32], index: 0, kind: input, shape index: {}]
  %s1 = inlined_call_operand.vmem [shape: f32[64,32], index: 1, kind: input, shape index: {}]
  %s2 = inlined_call_operand.vmem [shape: f32[1,32], index: 2, kind: input, shape index: {}]
  %s3 = inlined_call_operand.vmem [shape: f32[1,32], index: 3, kind: input, shape index: {}]
  %s4 = inlined_call_operand.vmem [shape: f32[2], index: 4, kind: input, shape index: {}]
  %s5 = inlined_call_operand.hbm [shape: f32[64,64], index: 5, kind: output, shape index: {}]
  %s6 = sld [smem:[#allocation0]]
  $region57: #{tpu_custom_call.1} parent=0
    _
  %s8 = ssub.s32 1, %s6
  %s9 = scalar_select 0, %s8, %s6
  $region1: #{tpu_custom_call.1} parent=0
    #allocation2 [shape = 'u8[512]{0}', space=smem, size = 0x200, scoped, tag = 'input window, operand 4, single buffered']
    #allocation3 [shape = 's32[2]{0}', space=sflag, size = 0x8, scoped, tag = 'scoped memory for tpu_custom_call.1']
    #allocation4 [shape = 's32[2]{0}', space=sflag, size = 0x8, scoped, tag = 'scoped memory for tpu_custom_call.1']
    #allocation5 [shape = 'u8[32768]{0}', space=vmem, size = 0x8000, scoped, tag = 'output window, operand 0']
    %10 = vsyncpa [#allocation4], 0
    %11 = vsyncpa [#allocation3], 0
    %s12 = scalar_lea.sflag [#allocation3], 1
    %13 = vsyncpa %s12, 0
    loop: start=0, step=1, limit=4
    $region2: #{tpu_custom_call.1} parent=1 // loop_pre_header
      _
    $region3: #{tpu_custom_call.1} parent=1 // loop_header
      %s15 = sphi 0, %s19
      %p16 = scmp.ge.s32.totalorder %s15, 4
      %s25 = sphi 0, %s27
      %s28 = sphi 0, %s25
      %s29 = sphi 0, %s28
      %s45 = sphi 0, %s29
      %s51 = sphi 0, %s53
      %s54 = sphi 0, %s51
      %s55 = sphi 0, %s54
      %s71 = sphi 0, %s55
      %s75 = sphi 0, %s75
      %s77 = sphi 0, %s75
      %s78 = sphi 0, %s77
      %s92 = sphi 0, %s78
      %s96 = sphi 0, %s96
      %s98 = sphi 0, %s96
      %s99 = sphi 0, %s98
      %s113 = sphi 0, %s99
      %s117 = sphi 0, %s117
      %s119 = sphi 0, %s117
      %s120 = sphi 0, %s119
      %s134 = sphi 0, %s120
      %s140 = sphi 0, %s142
      %s143 = sphi 0, %s140
      %s144 = sphi 0, %s143
      %s160 = sphi 0, %s144
    $region4: #{tpu_custom_call.1} parent=1 // loop_header_branch
      %18 = sbr.rel (%p16) target = $region8
    $region5: #{tpu_custom_call.1} parent=1 // loop_body
      %s20 = ssub.s32 %s15, 1
      %s21 = ssub.s32 %s15, 2
      %s22 = sadd.s32 %s15, 1
      %s23 = ssub.s32 %s15, %s22
      %p24 = scmp.eq.s32.totalorder %s23, 0
      %s26 = sadd.s32 %s25, 1
      %s27 = scalar_select %p24, %s25, %s26
      %p30 = pneg %p24
      %p31 = scmp.eq.s32.totalorder %s15, 1
      %p32 = por %p30, %p31
      %p33 = scmp.ne.s32.totalorder %s25, %s28
      %p34 = scmp.eq.s32.totalorder %s15, 0
      %p35 = por %p33, %p34
      %p36 = scmp.ne.s32.totalorder %s25, %s28
      %p37 = scmp.eq.s32.totalorder %s20, 1
      %p38 = por %p36, %p37
      %p39 = scmp.ne.s32.totalorder %s28, %s29
      %p40 = scmp.eq.s32.totalorder %s20, 0
      %p41 = por %p39, %p40
      %p42 = scmp.ne.s32.totalorder %s28, %s29
      %p43 = scmp.eq.s32.totalorder %s21, 1
      %p44 = por %p42, %p43
      %p46 = scmp.ne.s32.totalorder %s29, %s45
      %p47 = scmp.eq.s32.totalorder %s21, 0
      %p48 = por %p46, %p47
      %s49 = ssub.s32 %s15, %s22
      %p50 = scmp.eq.s32.totalorder %s49, 0
      %s52 = sadd.s32 %s51, 1
      %s53 = scalar_select %p50, %s51, %s52
      %p56 = pneg %p50
      %p57 = scmp.eq.s32.totalorder %s15, 1
      %p58 = por %p56, %p57
      %p59 = scmp.ne.s32.totalorder %s51, %s54
      %p60 = scmp.eq.s32.totalorder %s15, 0
      %p61 = por %p59, %p60
      %p62 = scmp.ne.s32.totalorder %s51, %s54
      %p63 = scmp.eq.s32.totalorder %s20, 1
      %p64 = por %p62, %p63
      %p65 = scmp.ne.s32.totalorder %s54, %s55
      %p66 = scmp.eq.s32.totalorder %s20, 0
      %p67 = por %p65, %p66
      %p68 = scmp.ne.s32.totalorder %s54, %s55
      %p69 = scmp.eq.s32.totalorder %s21, 1
      %p70 = por %p68, %p69
      %p72 = scmp.ne.s32.totalorder %s55, %s71
      %p73 = scmp.eq.s32.totalorder %s21, 0
      %p74 = por %p72, %p73
      %s76 = sadd.s32 %s75, 1
      %p79 = scmp.eq.s32.totalorder %s15, 1
      %p80 = scmp.ne.s32.totalorder %s75, %s77
      %p81 = scmp.eq.s32.totalorder %s15, 0
      %p82 = por %p80, %p81
      %p83 = scmp.ne.s32.totalorder %s75, %s77
      %p84 = scmp.eq.s32.totalorder %s20, 1
      %p85 = por %p83, %p84
      %p86 = scmp.ne.s32.totalorder %s77, %s78
      %p87 = scmp.eq.s32.totalorder %s20, 0
      %p88 = por %p86, %p87
      %p89 = scmp.ne.s32.totalorder %s77, %s78
      %p90 = scmp.eq.s32.totalorder %s21, 1
      %p91 = por %p89, %p90
      %p93 = scmp.ne.s32.totalorder %s78, %s92
      %p94 = scmp.eq.s32.totalorder %s21, 0
      %p95 = por %p93, %p94
      %s97 = sadd.s32 %s96, 1
      %p100 = scmp.eq.s32.totalorder %s15, 1
      %p101 = scmp.ne.s32.totalorder %s96, %s98
      %p102 = scmp.eq.s32.totalorder %s15, 0
      %p103 = por %p101, %p102
      %p104 = scmp.ne.s32.totalorder %s96, %s98
      %p105 = scmp.eq.s32.totalorder %s20, 1
      %p106 = por %p104, %p105
      %p107 = scmp.ne.s32.totalorder %s98, %s99
      %p108 = scmp.eq.s32.totalorder %s20, 0
      %p109 = por %p107, %p108
      %p110 = scmp.ne.s32.totalorder %s98, %s99
      %p111 = scmp.eq.s32.totalorder %s21, 1
      %p112 = por %p110, %p111
      %p114 = scmp.ne.s32.totalorder %s99, %s113
      %p115 = scmp.eq.s32.totalorder %s21, 0
      %p116 = por %p114, %p115
      %s118 = sadd.s32 %s117, 1
      %p121 = scmp.eq.s32.totalorder %s15, 1
      %p122 = scmp.ne.s32.totalorder %s117, %s119
      %p123 = scmp.eq.s32.totalorder %s15, 0
      %p124 = por %p122, %p123
      %p125 = scmp.ne.s32.totalorder %s117, %s119
      %p126 = scmp.eq.s32.totalorder %s20, 1
      %p127 = por %p125, %p126
      %p128 = scmp.ne.s32.totalorder %s119, %s120
      %p129 = scmp.eq.s32.totalorder %s20, 0
      %p130 = por %p128, %p129
      %p131 = scmp.ne.s32.totalorder %s119, %s120
      %p132 = scmp.eq.s32.totalorder %s21, 1
      %p133 = por %p131, %p132
      %p135 = scmp.ne.s32.totalorder %s120, %s134
      %p136 = scmp.eq.s32.totalorder %s21, 0
      %p137 = por %p135, %p136
      %s138 = ssub.s32 %s15, %s22
      %p139 = scmp.eq.s32.totalorder %s138, 0
      %s141 = sadd.s32 %s140, 1
      %s142 = scalar_select %p139, %s140, %s141
      %p145 = pneg %p139
      %p146 = scmp.eq.s32.totalorder %s15, 1
      %p147 = por %p145, %p146
      %p148 = scmp.ne.s32.totalorder %s140, %s143
      %p149 = scmp.eq.s32.totalorder %s15, 0
      %p150 = por %p148, %p149
      %p151 = scmp.ne.s32.totalorder %s140, %s143
      %p152 = scmp.eq.s32.totalorder %s20, 1
      %p153 = por %p151, %p152
      %p154 = scmp.ne.s32.totalorder %s143, %s144
      %p155 = scmp.eq.s32.totalorder %s20, 0
      %p156 = por %p154, %p155
      %p157 = scmp.ne.s32.totalorder %s143, %s144
      %p158 = scmp.eq.s32.totalorder %s21, 1
      %p159 = por %p157, %p158
      %p161 = scmp.ne.s32.totalorder %s144, %s160
      %p162 = scmp.eq.s32.totalorder %s21, 0
      %p163 = por %p161, %p162
      %p164 = scmp.le.s32.totalorder 1, %s15
      %p165 = scmp.lt.s32.totalorder %s15, 3
      %p166 = pnand %p164, %p165
      %p167 = pneg %p166
      // Predicated region
      $region9: #{tpu_custom_call.1} parent=5 // pred_check
        _
      $region10: #{tpu_custom_call.1} parent=5 // pred_check_branch
        %169 = sbr.rel (%p166) target = $region12
      $region11: #{tpu_custom_call.1} parent=5 // pred_region
        %s170 = ssub.s32 %s15, 1
        // Predicated region
        $region13: #{tpu_custom_call.1} parent=11 // pred_check
          %p171 = pneg %p88
        $region14: #{tpu_custom_call.1} parent=11 // pred_check_branch
          %173 = sbr.rel (%p171) target = $region16
        $region15: #{tpu_custom_call.1} parent=11 // pred_region
          _
        $region16: #{tpu_custom_call.1} parent=11 // pred_fallthru
          _
        // Predicated region
        $region17: #{tpu_custom_call.1} parent=11 // pred_check
          %p174 = pneg %p109
        $region18: #{tpu_custom_call.1} parent=11 // pred_check_branch
          %176 = sbr.rel (%p174) target = $region20
        $region19: #{tpu_custom_call.1} parent=11 // pred_region
          _
        $region20: #{tpu_custom_call.1} parent=11 // pred_fallthru
          _
        // Predicated region
        $region21: #{tpu_custom_call.1} parent=11 // pred_check
          %p177 = pneg %p130
        $region22: #{tpu_custom_call.1} parent=11 // pred_check_branch
          %179 = sbr.rel (%p177) target = $region24
        $region23: #{tpu_custom_call.1} parent=11 // pred_region
          %s181 = ssub.s32 16, 16
          %182 = vsyncadd [#allocation4], %s181
          %s184 = sshll.u32 %s4, 4
          %s185 = int_to_ptr.vmem [resolvable:$true] %s184
          %187 = dma.vmem_to_smem %s185, 16, [#allocation2], [#allocation4]
        $region24: #{tpu_custom_call.1} parent=11 // pred_fallthru
          _
      $region12: #{tpu_custom_call.1} parent=5 // pred_fallthru
        _
      %p188 = scmp.lt.s32.totalorder %s15, 2
      // Predicated region
      $region25: #{tpu_custom_call.1} parent=5 // pred_check
        %p189 = pneg %p188
      $region26: #{tpu_custom_call.1} parent=5 // pred_check_branch
        %191 = sbr.rel (%p189) target = $region28
      $region27: #{tpu_custom_call.1} parent=5 // pred_region
        // Predicated region
        $region29: #{tpu_custom_call.1} parent=27 // pred_check
          %p192 = pneg %p35
        $region30: #{tpu_custom_call.1} parent=27 // pred_check_branch
          %194 = sbr.rel (%p192) target = $region32
        $region31: #{tpu_custom_call.1} parent=27 // pred_region
          %s195 = smul.u32 4, %s15
          %p196 = scmp.lt.s32.totalorder %s195, 7
          %s197 = scalar_select %p196, %s195, 7
          %s198 = smul.addr %s197, 8
          %s199 = scalar_lea.vmem %s0, %s198
          %s200 = smul.u32 4, %s15
        $region32: #{tpu_custom_call.1} parent=27 // pred_fallthru
          _
        // Predicated region
        $region33: #{tpu_custom_call.1} parent=27 // pred_check
          %p201 = pneg %p61
        $region34: #{tpu_custom_call.1} parent=27 // pred_check_branch
          %203 = sbr.rel (%p201) target = $region36
        $region35: #{tpu_custom_call.1} parent=27 // pred_region
          %s204 = smul.u32 4, %s15
          %p205 = scmp.lt.s32.totalorder %s204, 7
          %s206 = scalar_select %p205, %s204, 7
          %s207 = smul.addr %s206, 8
          %s208 = scalar_lea.vmem %s1, %s207
          %s209 = smul.u32 4, %s15
        $region36: #{tpu_custom_call.1} parent=27 // pred_fallthru
          _
      $region28: #{tpu_custom_call.1} parent=5 // pred_fallthru
        _
      %p210 = scmp.le.s32.totalorder 1, %s15
      %p211 = scmp.lt.s32.totalorder %s15, 3
      %p212 = pnand %p210, %p211
      %p213 = pneg %p212
      // Predicated region
      $region37: #{tpu_custom_call.1} parent=5 // pred_check
        _
      $region38: #{tpu_custom_call.1} parent=5 // pred_check_branch
        %215 = sbr.rel (%p212) target = $region40
      $region39: #{tpu_custom_call.1} parent=5 // pred_region
        %s216 = ssub.s32 %s15, 1
        // Predicated region
        $region41: #{tpu_custom_call.1} parent=39 // pred_check
          %p217 = pneg %p130
        $region42: #{tpu_custom_call.1} parent=39 // pred_check_branch
          %219 = sbr.rel (%p217) target = $region44
        $region43: #{tpu_custom_call.1} parent=39 // pred_region
          %220 = dma.done [#allocation4], 16
        $region44: #{tpu_custom_call.1} parent=39 // pred_fallthru
          _
        %221 = sfence
        %s222 = smul.u32 4, %s20
        %p223 = scmp.lt.s32.totalorder %s222, 7
        %s224 = scalar_select %p223, %s222, 7
        %s225 = smul.addr %s224, 8
        %s226 = scalar_lea.vmem %s0, %s225
        %p227 = pneg %p41
        %p228 = pneg %p38
        %s229 = smul.u32 4, %s20
        %p230 = scmp.lt.s32.totalorder %s229, 7
        %s231 = scalar_select %p230, %s229, 7
        %s232 = smul.addr %s231, 8
        %s233 = scalar_lea.vmem %s1, %s232
        %p234 = pneg %p67
        %p235 = pneg %p64
        %p236 = pneg %p88
        %p237 = pneg %p85
        %p238 = pneg %p109
        %p239 = pneg %p106
        %p240 = pneg %p130
        %p241 = pneg %p127
        %p242 = pneg %p156
        %p243 = pneg %p153
        %s244 = sand.u32 %s143, 1
        %s245 = scalar_lea.sflag [#allocation3], %s244
        %s246 = sand.u32 %s143, 1
        %s247 = smul.addr %s246, 32
        %s248 = scalar_lea.vmem [#allocation5], %s247
        %s249 = smul.u32 4, %s20
        %p250 = scmp.lt.s32.totalorder %s249, 7
        %s251 = scalar_select %p250, %s249, 7
        %s252 = smul.addr %s251, 8
        %s253 = scalar_lea.vmem %s0, %s252
        %s254 = smul.u32 4, %s20
        %s255 = smul.u32 4, %s20
        %p256 = scmp.lt.s32.totalorder %s255, 7
        %s257 = scalar_select %p256, %s255, 7
        %s258 = smul.addr %s257, 8
        %s259 = scalar_lea.vmem %s1, %s258
        %s260 = smul.u32 4, %s20
        %s261 = smul.u32 4, %s20
        %v262 = vld [vmem:[%s253] sm:$0xff]
        %v263 = vld [vmem:[%s253 + $0x8] sm:$0xff]
        %v264 = vld [vmem:[%s253 + $0x10] sm:$0xff]
        %v265 = vld [vmem:[%s253 + $0x18] sm:$0xff]
        %v266 = vld [vmem:[%s259] sm:$0xff]
        %v267 = vld [vmem:[%s259 + $0x8] sm:$0xff]
        %v268 = vld [vmem:[%s259 + $0x10] sm:$0xff]
        %v269 = vld [vmem:[%s259 + $0x18] sm:$0xff]
        %v270 = vld [vmem:[%s2] sm:$0x1]
        %v271 = vld [vmem:[%s3] sm:$0x1]
        %s272 = sld [smem:[#allocation2]]
        %s273 = sld [smem:[#allocation2 + $0x1]]
        %v275 = vlaneseq
        %v276 = vshrl.u32 %v275, 7
        %v277 = vsub.s32 0, %v276
        %v278 = vrot.slane %v270, %v277
        %v280 = vmul.f32 %v262, %v278
        %v281 = vmul.f32 %v263, %v278
        %v282 = vmul.f32 %v264, %v278
        %v283 = vmul.f32 %v265, %v278
        %v285 = vlaneseq
        %v286 = vshrl.u32 %v285, 7
        %v287 = vsub.s32 0, %v286
        %v288 = vrot.slane %v271, %v287
        %v290 = vmul.f32 %v266, %v288
        %v291 = vmul.f32 %v267, %v288
        %v292 = vmul.f32 %v268, %v288
        %v293 = vmul.f32 %v269, %v288
        %v294 = vsub.f32 %v280, %v290
        %v295 = vsub.f32 %v281, %v291
        %v296 = vsub.f32 %v282, %v292
        %v297 = vsub.f32 %v283, %v293
        %vm298 = vcmask 261120
        %v299 = vsel %vm298, %v294, 0.0
        %300 = vadd.xlane.f32.xlu0 %v299
        %v301 = vpop.xlane.xlu0 %300
        %v302 = vsel %vm298, %v295, 0.0
        %303 = vadd.xlane.f32.xlu0 %v302
        %v304 = vpop.xlane.xlu0 %303
        %v305 = vsel %vm298, %v296, 0.0
        %306 = vadd.xlane.f32.xlu0 %v305
        %v307 = vpop.xlane.xlu0 %306
        %v308 = vsel %vm298, %v297, 0.0
        %309 = vadd.xlane.f32.xlu0 %v308
        %v310 = vpop.xlane.xlu0 %309
        %v311 = vmul.f32 %v262, %v288
        %v312 = vmul.f32 %v263, %v288
        %v313 = vmul.f32 %v264, %v288
        %v314 = vmul.f32 %v265, %v288
        %v315 = vmul.f32 %v266, %v278
        %v316 = vmul.f32 %v267, %v278
        %v317 = vmul.f32 %v268, %v278
        %v318 = vmul.f32 %v269, %v278
        %v319 = vadd.f32 %v311, %v315
        %v320 = vadd.f32 %v312, %v316
        %v321 = vadd.f32 %v313, %v317
        %v322 = vadd.f32 %v314, %v318
        %v323 = vsel %vm298, %v319, 0.0
        %324 = vadd.xlane.f32.xlu0 %v323
        %v325 = vpop.xlane.xlu0 %324
        %v326 = vsel %vm298, %v320, 0.0
        %327 = vadd.xlane.f32.xlu0 %v326
        %v328 = vpop.xlane.xlu0 %327
        %v329 = vsel %vm298, %v321, 0.0
        %330 = vadd.xlane.f32.xlu0 %v329
        %v331 = vpop.xlane.xlu0 %330
        %v332 = vsel %vm298, %v322, 0.0
        %333 = vadd.xlane.f32.xlu0 %v332
        %v334 = vpop.xlane.xlu0 %333
        %v335 = vsel %vm298, %v262, 0.0
        %336 = vadd.xlane.f32.xlu0 %v335
        %v337 = vpop.xlane.xlu0 %336
        %v338 = vsel %vm298, %v263, 0.0
        %339 = vadd.xlane.f32.xlu0 %v338
        %v340 = vpop.xlane.xlu0 %339
        %v341 = vsel %vm298, %v264, 0.0
        %342 = vadd.xlane.f32.xlu0 %v341
        %v343 = vpop.xlane.xlu0 %342
        %v344 = vsel %vm298, %v265, 0.0
        %345 = vadd.xlane.f32.xlu0 %v344
        %v346 = vpop.xlane.xlu0 %345
        %v347 = vsel %vm298, %v266, 0.0
        %348 = vadd.xlane.f32.xlu0 %v347
        %v349 = vpop.xlane.xlu0 %348
        %v350 = vsel %vm298, %v267, 0.0
        %351 = vadd.xlane.f32.xlu0 %v350
        %v352 = vpop.xlane.xlu0 %351
        %v353 = vsel %vm298, %v268, 0.0
        %354 = vadd.xlane.f32.xlu0 %v353
        %v355 = vpop.xlane.xlu0 %354
        %v356 = vsel %vm298, %v269, 0.0
        %357 = vadd.xlane.f32.xlu0 %v356
        %v358 = vpop.xlane.xlu0 %357
        %v359 = vmul.f32 %v337, %v278
        %v360 = vmul.f32 %v340, %v278
        %v361 = vmul.f32 %v343, %v278
        %v362 = vmul.f32 %v346, %v278
        %v363 = vadd.f32 %v301, %v359
        %v364 = vadd.f32 %v304, %v360
        %v365 = vadd.f32 %v307, %v361
        %v366 = vadd.f32 %v310, %v362
        %v367 = vmul.f32 %v349, %v288
        %v368 = vmul.f32 %v352, %v288
        %v369 = vmul.f32 %v355, %v288
        %v370 = vmul.f32 %v358, %v288
        %v371 = vadd.f32 %v363, %v367
        %v372 = vadd.f32 %v364, %v368
        %v373 = vadd.f32 %v365, %v369
        %v374 = vadd.f32 %v366, %v370
        %v375 = vstv %s272
        %v376 = vadd.f32 %v371, %v375
        %v377 = vadd.f32 %v372, %v375
        %v378 = vadd.f32 %v373, %v375
        %v379 = vadd.f32 %v374, %v375
        %v380 = vmul.f32 %v349, %v278
        %v381 = vmul.f32 %v352, %v278
        %v382 = vmul.f32 %v355, %v278
        %v383 = vmul.f32 %v358, %v278
        %v384 = vadd.f32 %v325, %v380
        %v385 = vadd.f32 %v328, %v381
        %v386 = vadd.f32 %v331, %v382
        %v387 = vadd.f32 %v334, %v383
        %v388 = vmul.f32 %v337, %v288
        %v389 = vmul.f32 %v340, %v288
        %v390 = vmul.f32 %v343, %v288
        %v391 = vmul.f32 %v346, %v288
        %v392 = vsub.f32 %v384, %v388
        %v393 = vsub.f32 %v385, %v389
        %v394 = vsub.f32 %v386, %v390
        %v395 = vsub.f32 %v387, %v391
        %v396 = vstv %s273
        %v397 = vadd.f32 %v392, %v396
        %v398 = vadd.f32 %v393, %v396
        %v399 = vadd.f32 %v394, %v396
        %v400 = vadd.f32 %v395, %v396
        %405 = vrot.lane.b32.xlu0 %v397, 32
        %v406 = vpop.permute.xlu0 %405
        %407 = vrot.lane.b32.xlu0 %v398, 32
        %v408 = vpop.permute.xlu0 %407
        %409 = vrot.lane.b32.xlu0 %v399, 32
        %v410 = vpop.permute.xlu0 %409
        %411 = vrot.lane.b32.xlu0 %v400, 32
        %v412 = vpop.permute.xlu0 %411
        %v417 = vsel %vm298, %v376, %v406
        %v418 = vsel %vm298, %v377, %v408
        %v419 = vsel %vm298, %v378, %v410
        %v420 = vsel %vm298, %v379, %v412
        %vm421 = vcmask 523264
        %422 = vst.msk [vmem:[%s248] sm:$0xff] %vm421, %v417
        %423 = vst.msk [vmem:[%s248 + $0x8] sm:$0xff] %vm421, %v418
        %424 = vst.msk [vmem:[%s248 + $0x10] sm:$0xff] %vm421, %v419
        %425 = vst.msk [vmem:[%s248 + $0x18] sm:$0xff] %vm421, %v420
        %s426 = sand.u32 %s143, 1
        %s427 = scalar_lea.sflag [#allocation3], %s426
        %s428 = sand.u32 %s143, 1
        %s429 = smul.addr %s428, 32
        %s430 = scalar_lea.vmem [#allocation5], %s429
        // Predicated region
        $region45: #{tpu_custom_call.1} parent=39 // pred_check
          %p431 = pneg %p153
        $region46: #{tpu_custom_call.1} parent=39 // pred_check_branch
          %433 = sbr.rel (%p431) target = $region48
        $region47: #{tpu_custom_call.1} parent=39 // pred_region
          %s434 = smul.u32 4, %s20
          %s436 = ssub.s32 512, 512
          %437 = vsyncadd %s427, %s436
          %s438 = smul.addr %s434, 128
          %s439 = scalar_lea.hbm %s5, %s438
          %s440 = sshll.u32 %s430, 4
          %s441 = int_to_ptr.vmem [resolvable:$true] %s440
          %446 = dma.vmem_to_hbm [thread:$0]  %s441, 512, %s439, %s427, 128, 128, 8
        $region48: #{tpu_custom_call.1} parent=39 // pred_fallthru
          _
      $region40: #{tpu_custom_call.1} parent=5 // pred_fallthru
        _
      %p447 = scmp.le.s32.totalorder 2, %s15
      // Predicated region
      $region49: #{tpu_custom_call.1} parent=5 // pred_check
        %p448 = pneg %p447
      $region50: #{tpu_custom_call.1} parent=5 // pred_check_branch
        %450 = sbr.rel (%p448) target = $region52
      $region51: #{tpu_custom_call.1} parent=5 // pred_region
        %s451 = ssub.s32 %s15, 2
        // Predicated region
        $region53: #{tpu_custom_call.1} parent=51 // pred_check
          %p452 = pneg %p159
        $region54: #{tpu_custom_call.1} parent=51 // pred_check_branch
          %454 = sbr.rel (%p452) target = $region56
        $region55: #{tpu_custom_call.1} parent=51 // pred_region
          %s455 = sand.u32 %s144, 1
          %s456 = scalar_lea.sflag [#allocation3], %s455
          %s457 = sand.u32 %s144, 1
          %s458 = smul.addr %s457, 32
          %s459 = scalar_lea.vmem [#allocation5], %s458
          %460 = dma.done %s456, 512
        $region56: #{tpu_custom_call.1} parent=51 // pred_fallthru
          _
      $region52: #{tpu_custom_call.1} parent=5 // pred_fallthru
        _
    $region6: #{tpu_custom_call.1} parent=1 // loop_footer
      %s19 = sadd.s32 1, %s15
    $region7: #{tpu_custom_call.1} parent=1 // loop_footer_branch
      %14 = sbr.rel target = $region3
    $region8: #{tpu_custom_call.1} parent=1 // loop_exit
      _
    %461 = vsyncpa [#allocation3], 1
    %s462 = scalar_lea.sflag [#allocation3], 1
    %463 = vsyncpa %s462, 1
    %464 = vsyncpa [#allocation4], 1
    %s465 = scalar_lea.sflag [#allocation4], 1
    %466 = vsyncpa %s465, 1

</llo_original>
